<compile_context>
chip_gen: v7x
topology: tpu7x:2x2x1
jax: 0.10.0
libtpu: 0.0.40
codegen_flags: <defaults>
</compile_context>

<pallas_src>
import math

import jax
import jax.numpy as jnp
from jax.experimental import pallas as pl
from jax.experimental.pallas import tpu as pltpu

H1 = 128            # first hidden size (from the module)
H2 = 256            # second hidden size (from the module)
LEAKY_SLOPE = 0.01  # nn.LeakyReLU default negative_slope


def _round_up(x, m):
    return (x + m - 1) // m * m


def encoder_kernel(x_ref, w1_ref, b1_ref, w2_ref, b2_ref, w3_ref, b3_ref, o_ref):
    """Fused 3-layer MLP: ReLU -> ReLU -> LeakyReLU.  bf16 MXU, f32 accum/VPU."""
    x = x_ref[...].astype(jnp.bfloat16)                                # (TB, Din) cast in-kernel
    h = jnp.dot(x, w1_ref[...], preferred_element_type=jnp.float32)    # (TB, 128) f32
    h = jnp.maximum(h + b1_ref[...], 0.0)                              # ReLU (VPU, f32)
    h = jnp.dot(h.astype(jnp.bfloat16), w2_ref[...],
                preferred_element_type=jnp.float32)                    # (TB, 256) f32
    h = jnp.maximum(h + b2_ref[...], 0.0)                              # ReLU
    h = jnp.dot(h.astype(jnp.bfloat16), w3_ref[...],
                preferred_element_type=jnp.float32)                    # (TB, Dout) f32
    h = h + b3_ref[...]
    o_ref[...] = jnp.where(h >= 0.0, h, LEAKY_SLOPE * h).astype(o_ref.dtype)  # LeakyReLU


def prepare_params(w1, b1, w2, b2, w3, b3):
    """One-time weight prep: bf16 MXU operands, f32 row-vector biases.

    Weights are stored (in_features, out_features) so the kernel does x @ W.
    Call once and reuse — do NOT redo this per forward call.
    """
    bf16 = jnp.bfloat16
    return (
        w1.astype(bf16),
        b1.reshape(1, -1).astype(jnp.float32),
        w2.astype(bf16),
        b2.reshape(1, -1).astype(jnp.float32),
        w3.astype(bf16),
        b3.reshape(1, -1).astype(jnp.float32),
    )


def _choose_batch_tile(batch):
    """16-aligned batch tile: one tile for small batches, ~1024 rows for large
    batches, and always >=2 grid steps once the batch is big enough to matter
    (so v7x's two TensorCores both get work on the 'parallel' axis)."""
    b16 = _round_up(batch, 16)
    if b16 <= 512:
        return b16
    return min(1024, _round_up((b16 + 1) // 2, 16))


def linear_state_encoder_forward(x, params):
    """Pallas forward.  x: (B, input_dims) f32; params from prepare_params()."""
    w1, b1, w2, b2, w3, b3 = params
    batch, d_in = x.shape
    d_out = w3.shape[1]

    tb = _choose_batch_tile(batch)
    b_pad = _round_up(batch, tb)
    if b_pad != batch:
        x = jnp.pad(x, ((0, b_pad - batch), (0, 0)))   # rows only; lanes stay = d_in

    grid = (b_pad // tb,)

    # x / out tiles move with the grid; weights & biases stay resident in VMEM.
    x_spec = pl.BlockSpec((tb, d_in), lambda i: (i, 0))
    o_spec = pl.BlockSpec((tb, d_out), lambda i: (i, 0))
    resident = lambda shape: pl.BlockSpec(shape, lambda i: (0, 0))

    flops = 2 * b_pad * (d_in * H1 + H1 * H2 + H2 * d_out)
    bytes_accessed = (
        x.size * x.dtype.itemsize
        + sum(int(p.size) * p.dtype.itemsize for p in params)
        + b_pad * d_out * 4
    )

    out = pl.pallas_call(
        encoder_kernel,
        out_shape=jax.ShapeDtypeStruct((b_pad, d_out), jnp.float32),
        grid_spec=pltpu.PrefetchScalarGridSpec(
            num_scalar_prefetch=0,
            grid=grid,
            in_specs=[
                x_spec,
                resident(w1.shape),
                resident(b1.shape),
                resident(w2.shape),
                resident(b2.shape),
                resident(w3.shape),
                resident(b3.shape),
            ],
            out_specs=o_spec,
        ),
        compiler_params=pltpu.CompilerParams(
            dimension_semantics=("parallel",),
            vmem_limit_bytes=32 * 1024 * 1024,
        ),
        cost_estimate=pl.CostEstimate(
            flops=flops, transcendentals=0, bytes_accessed=bytes_accessed
        ),
    )(x, w1, b1, w2, b2, w3, b3)

    # Only row padding (if any) remains to strip; lane dim is already d_out.
    return out if b_pad == batch else out[:batch]


def _reference(x, w1, b1, w2, b2, w3, b3):
    """Pure-JAX reference with the same bf16-operand / f32-accumulate recipe."""
    bf16 = jnp.bfloat16
    h = jnp.dot(x.astype(bf16), w1.astype(bf16),
                preferred_element_type=jnp.float32) + b1.reshape(1, -1)
    h = jnp.maximum(h, 0.0)
    h = jnp.dot(h.astype(bf16), w2.astype(bf16),
                preferred_element_type=jnp.float32) + b2.reshape(1, -1)
    h = jnp.maximum(h, 0.0)
    h = jnp.dot(h.astype(bf16), w3.astype(bf16),
                preferred_element_type=jnp.float32) + b3.reshape(1, -1)
    return jnp.where(h >= 0.0, h, LEAKY_SLOPE * h)


if __name__ == "__main__":
    batch = 8
    input_dims = 32
    output_dims = 64

    key = jax.random.PRNGKey(0)
    kx, k1, k2, k3 = jax.random.split(key, 4)
    x = jax.random.normal(kx, (batch, input_dims), jnp.float32)

    # module init: orthogonal_(weight, sqrt(2)), bias zero
    ortho = jax.nn.initializers.orthogonal(scale=math.sqrt(2.0))
    w1 = ortho(k1, (input_dims, H1), jnp.float32)
    w2 = ortho(k2, (H1, H2), jnp.float32)
    w3 = ortho(k3, (H2, output_dims), jnp.float32)
    b1 = jnp.zeros((1, H1), jnp.float32)
    b2 = jnp.zeros((1, H2), jnp.float32)
    b3 = jnp.zeros((1, output_dims), jnp.float32)

    params = prepare_params(w1, b1, w2, b2, w3, b3)   # one-time weight prep

    out = linear_state_encoder_forward(x, params)
    out = jax.block_until_ready(out)

    ref = _reference(x, w1, b1, w2, b2, w3, b3)
    assert out.shape == (batch, output_dims), out.shape
    assert jnp.allclose(out, ref, atol=1e-2, rtol=1e-2), "mismatch vs JAX reference"

    print("KERNEL_OK")
</pallas_src>

<mosaic_0001>
module attributes {stable_mosaic.version = 11 : i64} {
  func.func @encoder_kernel(%arg0: i32, %arg1: memref<16x32xf32, #tpu.memory_space<vmem>>, %arg2: memref<32x128xbf16, #tpu.memory_space<vmem>>, %arg3: memref<1x128xf32, #tpu.memory_space<vmem>>, %arg4: memref<128x256xbf16, #tpu.memory_space<vmem>>, %arg5: memref<1x256xf32, #tpu.memory_space<vmem>>, %arg6: memref<256x64xbf16, #tpu.memory_space<vmem>>, %arg7: memref<1x64xf32, #tpu.memory_space<vmem>>, %arg8: memref<16x64xf32, #tpu.memory_space<vmem>>) attributes {dimension_semantics = [#tpu.dimension_semantics<parallel>], iteration_bounds = array<i64: 1>, scalar_prefetch = 0 : i64, scratch_operands = 0 : i64, tpu.core_type = #tpu.core_type<tc>, window_params = [{transform_indices = @transform_0, window_bounds = array<i64: 16, 32>}, {pipeline_mode = #tpu.pipeline_mode<synchronous>, transform_indices = @transform_1, window_bounds = array<i64: 32, 128>}, {pipeline_mode = #tpu.pipeline_mode<synchronous>, transform_indices = @transform_2, window_bounds = array<i64: 1, 128>}, {pipeline_mode = #tpu.pipeline_mode<synchronous>, transform_indices = @transform_3, window_bounds = array<i64: 128, 256>}, {pipeline_mode = #tpu.pipeline_mode<synchronous>, transform_indices = @transform_4, window_bounds = array<i64: 1, 256>}, {pipeline_mode = #tpu.pipeline_mode<synchronous>, transform_indices = @transform_5, window_bounds = array<i64: 256, 64>}, {pipeline_mode = #tpu.pipeline_mode<synchronous>, transform_indices = @transform_6, window_bounds = array<i64: 1, 64>}, {transform_indices = @transform_7, window_bounds = array<i64: 16, 64>}]} {
    %c0 = arith.constant 0 : index
    %c0_0 = arith.constant 0 : index
    %0 = vector.load %arg1[%c0, %c0_0] : memref<16x32xf32, #tpu.memory_space<vmem>>, vector<16x32xf32>
    %1 = arith.truncf %0 : vector<16x32xf32> to vector<16x32xbf16>
    %c0_1 = arith.constant 0 : index
    %c0_2 = arith.constant 0 : index
    %2 = vector.load %arg2[%c0_1, %c0_2] : memref<32x128xbf16, #tpu.memory_space<vmem>>, vector<32x128xbf16>
    %cst = arith.constant dense<0.000000e+00> : vector<16x128xf32>
    %3 = tpu.matmul %1, %2, %cst {dimension_numbers = #tpu.dot_dimension_numbers<[1], [0], [0], [1], [0, 0, 1, 1], [], []>} : vector<16x32xbf16>, vector<32x128xbf16>, vector<16x128xf32> -> vector<16x128xf32>
    %c0_3 = arith.constant 0 : index
    %c0_4 = arith.constant 0 : index
    %4 = vector.load %arg3[%c0_3, %c0_4] : memref<1x128xf32, #tpu.memory_space<vmem>>, vector<1x128xf32>
    %5 = vector.broadcast %4 : vector<1x128xf32> to vector<16x128xf32>
    %6 = arith.addf %3, %5 : vector<16x128xf32>
    %cst_5 = arith.constant 0.000000e+00 : f32
    %7 = vector.broadcast %cst_5 : f32 to vector<16x128xf32>
    %8 = arith.maximumf %6, %7 : vector<16x128xf32>
    %9 = arith.truncf %8 : vector<16x128xf32> to vector<16x128xbf16>
    %c0_6 = arith.constant 0 : index
    %c0_7 = arith.constant 0 : index
    %10 = vector.load %arg4[%c0_6, %c0_7] : memref<128x256xbf16, #tpu.memory_space<vmem>>, vector<128x256xbf16>
    %cst_8 = arith.constant dense<0.000000e+00> : vector<16x256xf32>
    %11 = tpu.matmul %9, %10, %cst_8 {dimension_numbers = #tpu.dot_dimension_numbers<[1], [0], [0], [1], [0, 0, 1, 1], [], []>} : vector<16x128xbf16>, vector<128x256xbf16>, vector<16x256xf32> -> vector<16x256xf32>
    %c0_9 = arith.constant 0 : index
    %c0_10 = arith.constant 0 : index
    %12 = vector.load %arg5[%c0_9, %c0_10] : memref<1x256xf32, #tpu.memory_space<vmem>>, vector<1x256xf32>
    %13 = vector.broadcast %12 : vector<1x256xf32> to vector<16x256xf32>
    %14 = arith.addf %11, %13 : vector<16x256xf32>
    %cst_11 = arith.constant 0.000000e+00 : f32
    %15 = vector.broadcast %cst_11 : f32 to vector<16x256xf32>
    %16 = arith.maximumf %14, %15 : vector<16x256xf32>
    %17 = arith.truncf %16 : vector<16x256xf32> to vector<16x256xbf16>
    %c0_12 = arith.constant 0 : index
    %c0_13 = arith.constant 0 : index
    %18 = vector.load %arg6[%c0_12, %c0_13] : memref<256x64xbf16, #tpu.memory_space<vmem>>, vector<256x64xbf16>
    %cst_14 = arith.constant dense<0.000000e+00> : vector<16x64xf32>
    %19 = tpu.matmul %17, %18, %cst_14 {dimension_numbers = #tpu.dot_dimension_numbers<[1], [0], [0], [1], [0, 0, 1, 1], [], []>} : vector<16x256xbf16>, vector<256x64xbf16>, vector<16x64xf32> -> vector<16x64xf32>
    %c0_15 = arith.constant 0 : index
    %c0_16 = arith.constant 0 : index
    %20 = vector.load %arg7[%c0_15, %c0_16] : memref<1x64xf32, #tpu.memory_space<vmem>>, vector<1x64xf32>
    %21 = vector.broadcast %20 : vector<1x64xf32> to vector<16x64xf32>
    %22 = arith.addf %19, %21 : vector<16x64xf32>
    %cst_17 = arith.constant 0.000000e+00 : f32
    %23 = vector.broadcast %cst_17 : f32 to vector<16x64xf32>
    %24 = arith.cmpf oge, %22, %23 : vector<16x64xf32>
    %cst_18 = arith.constant 0.00999999977 : f32
    %25 = vector.broadcast %cst_18 : f32 to vector<16x64xf32>
    %26 = arith.mulf %25, %22 : vector<16x64xf32>
    %27 = arith.select %24, %22, %26 : vector<16x64xi1>, vector<16x64xf32>
    %c0_19 = arith.constant 0 : index
    %c0_20 = arith.constant 0 : index
    %28 = vector.load %arg8[%c0_19, %c0_20] : memref<16x64xf32, #tpu.memory_space<vmem>>, vector<16x64xf32>
    tpu.vector_store %arg8[%c0_19, %c0_20], %27 {strides = array<i32>} : memref<16x64xf32, #tpu.memory_space<vmem>>, vector<16x64xf32>,
    return
  }
  func.func @transform_0(%arg0: i32) -> (i32, i32) {
    %c0_i32 = arith.constant 0 : i32
    %c0_i32_0 = arith.constant 0 : i32
    return %arg0, %c0_i32 : i32, i32
  }
  func.func @transform_1(%arg0: i32) -> (i32, i32) {
    %c0_i32 = arith.constant 0 : i32
    %c0_i32_0 = arith.constant 0 : i32
    %c0_i32_1 = arith.constant 0 : i32
    return %c0_i32, %c0_i32_0 : i32, i32
  }
  func.func @transform_2(%arg0: i32) -> (i32, i32) {
    %c0_i32 = arith.constant 0 : i32
    %c0_i32_0 = arith.constant 0 : i32
    %c0_i32_1 = arith.constant 0 : i32
    return %c0_i32, %c0_i32_0 : i32, i32
  }
  func.func @transform_3(%arg0: i32) -> (i32, i32) {
    %c0_i32 = arith.constant 0 : i32
    %c0_i32_0 = arith.constant 0 : i32
    %c0_i32_1 = arith.constant 0 : i32
    return %c0_i32, %c0_i32_0 : i32, i32
  }
  func.func @transform_4(%arg0: i32) -> (i32, i32) {
    %c0_i32 = arith.constant 0 : i32
    %c0_i32_0 = arith.constant 0 : i32
    %c0_i32_1 = arith.constant 0 : i32
    return %c0_i32, %c0_i32_0 : i32, i32
  }
  func.func @transform_5(%arg0: i32) -> (i32, i32) {
    %c0_i32 = arith.constant 0 : i32
    %c0_i32_0 = arith.constant 0 : i32
    %c0_i32_1 = arith.constant 0 : i32
    return %c0_i32, %c0_i32_0 : i32, i32
  }
  func.func @transform_6(%arg0: i32) -> (i32, i32) {
    %c0_i32 = arith.constant 0 : i32
    %c0_i32_0 = arith.constant 0 : i32
    %c0_i32_1 = arith.constant 0 : i32
    return %c0_i32, %c0_i32_0 : i32, i32
  }
  func.func @transform_7(%arg0: i32) -> (i32, i32) {
    %c0_i32 = arith.constant 0 : i32
    %c0_i32_0 = arith.constant 0 : i32
    return %arg0, %c0_i32 : i32, i32
  }
}

</mosaic_0001>

<llo_original>
// kernel: tpu_custom_call.1
$region0: #{tpu_custom_call.1}
  #allocation0 [shape = 'u32[]', space=smem, size = 0x4, offset = 0x4, fixed_abs, tag = 'smem constant byte address 0x4 - core index']
  #allocation1 [shape = 'u32[144,128]{1,0:T(1,128)}', space=vmem, size = 0x12000, scoped, tag = 'internal scratch']
  %s0 = inlined_call_operand.vmem [shape: f32[16,32], index: 0, kind: input, shape index: {}]
  %s1 = inlined_call_operand.vmem [shape: bf16[32,128], index: 1, kind: input, shape index: {}]
  %s2 = inlined_call_operand.vmem [shape: f32[1,128], index: 2, kind: input, shape index: {}]
  %s3 = inlined_call_operand.vmem [shape: bf16[128,256], index: 3, kind: input, shape index: {}]
  %s4 = inlined_call_operand.vmem [shape: f32[1,256], index: 4, kind: input, shape index: {}]
  %s5 = inlined_call_operand.vmem [shape: bf16[256,64], index: 5, kind: input, shape index: {}]
  %s6 = inlined_call_operand.vmem [shape: f32[1,64], index: 6, kind: input, shape index: {}]
  %s7 = inlined_call_operand.hbm [shape: f32[16,64], index: 7, kind: output, shape index: {}]
  %s8 = sld [smem:[#allocation0]]
  $region38: #{tpu_custom_call.1} parent=0
    _
  %s10 = ssub.s32 1, %s8
  %s11 = scalar_select 0, %s10, %s8
  $region1: #{tpu_custom_call.1} parent=0
    #allocation2 [shape = 'u8[8192]{0}', space=vmem, size = 0x2000, scoped, tag = 'output window, operand 0, single buffered']
    #allocation3 [shape = 's32[1]{0}', space=sflag, size = 0x4, scoped, tag = 'scoped memory for tpu_custom_call.1']
    %12 = vsyncpa [#allocation3], 0
    // Predicated region
    $region2: #{tpu_custom_call.1} parent=1 // pred_check
      _
    $region3: #{tpu_custom_call.1} parent=1 // pred_check_branch
      %14 = sbr.rel (0) target = $region5
    $region4: #{tpu_custom_call.1} parent=1 // pred_region
      _
    $region5: #{tpu_custom_call.1} parent=1 // pred_fallthru
      _
    // Predicated region
    $region6: #{tpu_custom_call.1} parent=1 // pred_check
      _
    $region7: #{tpu_custom_call.1} parent=1 // pred_check_branch
      %16 = sbr.rel (0) target = $region9
    $region8: #{tpu_custom_call.1} parent=1 // pred_region
      _
    $region9: #{tpu_custom_call.1} parent=1 // pred_fallthru
      _
    // Predicated region
    $region10: #{tpu_custom_call.1} parent=1 // pred_check
      _
    $region11: #{tpu_custom_call.1} parent=1 // pred_check_branch
      %18 = sbr.rel (0) target = $region13
    $region12: #{tpu_custom_call.1} parent=1 // pred_region
      _
    $region13: #{tpu_custom_call.1} parent=1 // pred_fallthru
      _
    // Predicated region
    $region14: #{tpu_custom_call.1} parent=1 // pred_check
      _
    $region15: #{tpu_custom_call.1} parent=1 // pred_check_branch
      %20 = sbr.rel (0) target = $region17
    $region16: #{tpu_custom_call.1} parent=1 // pred_region
      _
    $region17: #{tpu_custom_call.1} parent=1 // pred_fallthru
      _
    // Predicated region
    $region18: #{tpu_custom_call.1} parent=1 // pred_check
      _
    $region19: #{tpu_custom_call.1} parent=1 // pred_check_branch
      %22 = sbr.rel (0) target = $region21
    $region20: #{tpu_custom_call.1} parent=1 // pred_region
      _
    $region21: #{tpu_custom_call.1} parent=1 // pred_fallthru
      _
    // Predicated region
    $region22: #{tpu_custom_call.1} parent=1 // pred_check
      _
    $region23: #{tpu_custom_call.1} parent=1 // pred_check_branch
      %24 = sbr.rel (0) target = $region25
    $region24: #{tpu_custom_call.1} parent=1 // pred_region
      _
    $region25: #{tpu_custom_call.1} parent=1 // pred_fallthru
      _
    // Predicated region
    $region26: #{tpu_custom_call.1} parent=1 // pred_check
      _
    $region27: #{tpu_custom_call.1} parent=1 // pred_check_branch
      %26 = sbr.rel (0) target = $region29
    $region28: #{tpu_custom_call.1} parent=1 // pred_region
      _
    $region29: #{tpu_custom_call.1} parent=1 // pred_fallthru
      _
    %v28 = vld [vmem:[%s0] sm:$0xff]
    %v29 = vld [vmem:[%s0 + $0x8] sm:$0xff]
    %v30 = vpack.c.bf16 %v29, %v28
    %v31 = vld [vmem:[%s1] sm:$0xf]
    %v32 = vld [vmem:[%s1 + $0x4] sm:$0xf]
    %v33 = vld [vmem:[%s1 + $0x8] sm:$0xf]
    %v34 = vld [vmem:[%s1 + $0xc] sm:$0xf]
    %v35 = vld [vmem:[%s2] sm:$0x1]
    %v37 = vlaneseq
    %v38 = vshrl.u32 %v37, 7
    %v39 = vsub.s32 0, %v38
    %v40 = vrot.slane %v35, %v39
    %v46 = vunpack.c.l.b16 %v31
    %v47 = vunpack.c.l.b16 %v32
    %v48 = vunpack.c.l.b16 %v33
    %v49 = vunpack.c.l.b16 %v34
    %v50 = vpack.c.b16 %v47, %v46
    %v51 = vpack.c.b16 %v49, %v48
    %vm54 = vcmask 261120
    %v56 = vsel %vm54, %v30, 0
    %58 = vmatprep.subr.bf16.mxu0 0
    %59 = vmatpush1.bf16.msra.mxu0 %v50
    %60 = vmatprep.subr.bf16.mxu0 0
    %61 = vmatpush1.bf16.msra.mxu0 %v51
    %62 = vmatprep.subr.bf16.mxu0 0
    %63 = vmatpush1.bf16.msra.mxu0 0
    %64 = vmatprep.subr.bf16.mxu0 0
    %65 = vmatpush1.bf16.msra.mxu0 0
    %66 = vmatprep.subr.bf16.mxu0 0
    %67 = vmatpush1.bf16.msra.mxu0 0
    %68 = vmatprep.subr.bf16.mxu0 0
    %69 = vmatpush1.bf16.msra.mxu0 0
    %70 = vmatprep.subr.bf16.mxu0 0
    %71 = vmatpush1.bf16.msra.mxu0 0
    %72 = vmatprep.subr.bf16.mxu0 0
    %73 = vmatpush1.bf16.msra.mxu0 0
    %74 = vmatprep.subr.bf16.mxu0 0
    %75 = vmatpush1.bf16.msra.mxu0 0
    %76 = vmatprep.subr.bf16.mxu0 0
    %77 = vmatpush1.bf16.msra.mxu0 0
    %78 = vmatprep.subr.bf16.mxu0 0
    %79 = vmatpush1.bf16.msra.mxu0 0
    %80 = vmatprep.subr.bf16.mxu0 0
    %81 = vmatpush1.bf16.msra.mxu0 0
    %82 = vmatprep.subr.bf16.mxu0 0
    %83 = vmatpush1.bf16.msra.mxu0 0
    %84 = vmatprep.subr.bf16.mxu0 0
    %85 = vmatpush1.bf16.msra.mxu0 0
    %86 = vmatprep.subr.bf16.mxu0 0
    %87 = vmatpush1.bf16.msra.mxu0 0
    %88 = vmatprep.subr.bf16.mxu0 0
    %89 = vmatpush1.bf16.msra.mxu0 0
    %90 = vmatprep.mubr.bf16.mxu0 0
    %91 = vmatmul.mubr.bf16.gmra.mrb[0].mxu0 %v56
    %v92 = vpop.f32.mrb[0].mxu0
    %v93 = vadd.f32 %v40, %v92
    %v94 = vpop.f32.mrb[0].mxu0
    %v95 = vpop.f32.mrb[0].mxu0
    %v96 = vadd.f32 %v40, %v95
    %v97 = vpop.f32.mrb[0].mxu0
    %98 = vdwg.mxu0
    %v99 = vmax.f32 %v93, 0.0
    %v100 = vmax.f32 %v96, 0.0
    %v101 = vpack.c.bf16 %v100, %v99
    %v102 = vld [vmem:[%s3] sm:$0xff]
    %v103 = vld [vmem:[%s3 + $0x8] sm:$0xff]
    %v104 = vld [vmem:[%s3 + $0x10] sm:$0xff]
    %v105 = vld [vmem:[%s3 + $0x18] sm:$0xff]
    %v106 = vld [vmem:[%s3 + $0x20] sm:$0xff]
    %v107 = vld [vmem:[%s3 + $0x28] sm:$0xff]
    %v108 = vld [vmem:[%s3 + $0x30] sm:$0xff]
    %v109 = vld [vmem:[%s3 + $0x38] sm:$0xff]
    %v110 = vld [vmem:[%s3 + $0x40] sm:$0xff]
    %v111 = vld [vmem:[%s3 + $0x48] sm:$0xff]
    %v112 = vld [vmem:[%s3 + $0x50] sm:$0xff]
    %v113 = vld [vmem:[%s3 + $0x58] sm:$0xff]
    %v114 = vld [vmem:[%s3 + $0x60] sm:$0xff]
    %v115 = vld [vmem:[%s3 + $0x68] sm:$0xff]
    %v116 = vld [vmem:[%s3 + $0x70] sm:$0xff]
    %v117 = vld [vmem:[%s3 + $0x78] sm:$0xff]
    %v118 = vld [vmem:[%s4] sm:$0x3]
    %v120 = vlaneseq
    %v121 = vshrl.u32 %v120, 7
    %v122 = vsub.s32 0, %v121
    %v123 = vrot.slane %v118, %v122
    %v124 = vlaneseq
    %v125 = vshrl.u32 %v124, 7
    %v126 = vsub.s32 1, %v125
    %v127 = vrot.slane %v118, %v126
    %v146 = vunpack.c.l.b16 %v102
    %v147 = vunpack.c.h.b16 %v102
    %v148 = vunpack.c.l.b16 %v103
    %v149 = vunpack.c.h.b16 %v103
    %v150 = vunpack.c.l.b16 %v104
    %v151 = vunpack.c.h.b16 %v104
    %v152 = vunpack.c.l.b16 %v105
    %v153 = vunpack.c.h.b16 %v105
    %v154 = vunpack.c.l.b16 %v106
    %v155 = vunpack.c.h.b16 %v106
    %v156 = vunpack.c.l.b16 %v107
    %v157 = vunpack.c.h.b16 %v107
    %v158 = vunpack.c.l.b16 %v108
    %v159 = vunpack.c.h.b16 %v108
    %v160 = vunpack.c.l.b16 %v109
    %v161 = vunpack.c.h.b16 %v109
    %v162 = vunpack.c.l.b16 %v110
    %v163 = vunpack.c.h.b16 %v110
    %v164 = vunpack.c.l.b16 %v111
    %v165 = vunpack.c.h.b16 %v111
    %v166 = vunpack.c.l.b16 %v112
    %v167 = vunpack.c.h.b16 %v112
    %v168 = vunpack.c.l.b16 %v113
    %v169 = vunpack.c.h.b16 %v113
    %v170 = vunpack.c.l.b16 %v114
    %v171 = vunpack.c.h.b16 %v114
    %v172 = vunpack.c.l.b16 %v115
    %v173 = vunpack.c.h.b16 %v115
    %v174 = vunpack.c.l.b16 %v116
    %v175 = vunpack.c.h.b16 %v116
    %v176 = vunpack.c.l.b16 %v117
    %v177 = vunpack.c.h.b16 %v117
    %v178 = vpack.c.b16 %v148, %v146
    %v179 = vpack.c.b16 %v149, %v147
    %v180 = vpack.c.b16 %v152, %v150
    %v181 = vpack.c.b16 %v153, %v151
    %v182 = vpack.c.b16 %v156, %v154
    %v183 = vpack.c.b16 %v157, %v155
    %v184 = vpack.c.b16 %v160, %v158
    %v185 = vpack.c.b16 %v161, %v159
    %v186 = vpack.c.b16 %v164, %v162
    %v187 = vpack.c.b16 %v165, %v163
    %v188 = vpack.c.b16 %v168, %v166
    %v189 = vpack.c.b16 %v169, %v167
    %v190 = vpack.c.b16 %v172, %v170
    %v191 = vpack.c.b16 %v173, %v171
    %v192 = vpack.c.b16 %v176, %v174
    %v193 = vpack.c.b16 %v177, %v175
    %210 = vmatprep.subr.bf16.mxu0 %v179
    %211 = vmatpush1.bf16.msra.mxu0 %v178
    %212 = vmatprep.subr.bf16.mxu0 %v181
    %213 = vmatpush1.bf16.msra.mxu0 %v180
    %214 = vmatprep.subr.bf16.mxu0 %v183
    %215 = vmatpush1.bf16.msra.mxu0 %v182
    %216 = vmatprep.subr.bf16.mxu0 %v185
    %217 = vmatpush1.bf16.msra.mxu0 %v184
    %218 = vmatprep.subr.bf16.mxu0 %v187
    %219 = vmatpush1.bf16.msra.mxu0 %v186
    %220 = vmatprep.subr.bf16.mxu0 %v189
    %221 = vmatpush1.bf16.msra.mxu0 %v188
    %222 = vmatprep.subr.bf16.mxu0 %v191
    %223 = vmatpush1.bf16.msra.mxu0 %v190
    %224 = vmatprep.subr.bf16.mxu0 %v193
    %225 = vmatpush1.bf16.msra.mxu0 %v192
    %226 = vmatprep.subr.bf16.mxu0 0
    %227 = vmatpush1.bf16.msra.mxu0 0
    %228 = vmatprep.subr.bf16.mxu0 0
    %229 = vmatpush1.bf16.msra.mxu0 0
    %230 = vmatprep.subr.bf16.mxu0 0
    %231 = vmatpush1.bf16.msra.mxu0 0
    %232 = vmatprep.subr.bf16.mxu0 0
    %233 = vmatpush1.bf16.msra.mxu0 0
    %234 = vmatprep.subr.bf16.mxu0 0
    %235 = vmatpush1.bf16.msra.mxu0 0
    %236 = vmatprep.subr.bf16.mxu0 0
    %237 = vmatpush1.bf16.msra.mxu0 0
    %238 = vmatprep.subr.bf16.mxu0 0
    %239 = vmatpush1.bf16.msra.mxu0 0
    %240 = vmatprep.subr.bf16.mxu0 0
    %241 = vmatpush1.bf16.msra.mxu0 0
    %242 = vmatprep.mubr.bf16.mxu0 0
    %243 = vmatmul.mubr.bf16.gmra.mrb[0].mxu0 %v101
    %v244 = vpop.f32.mrb[0].mxu0
    %v245 = vadd.f32 %v123, %v244
    %v246 = vpop.f32.mrb[0].mxu0
    %v247 = vadd.f32 %v127, %v246
    %v248 = vpop.f32.mrb[0].mxu0
    %v249 = vadd.f32 %v123, %v248
    %v250 = vpop.f32.mrb[0].mxu0
    %v251 = vadd.f32 %v127, %v250
    %252 = vdwg.mxu0
    %v253 = vmax.f32 %v245, 0.0
    %v254 = vmax.f32 %v247, 0.0
    %v255 = vmax.f32 %v249, 0.0
    %v256 = vmax.f32 %v251, 0.0
    %v257 = vpack.c.bf16 %v255, %v253
    %v258 = vpack.c.bf16 %v256, %v254
    %v259 = vld [vmem:[%s5] sm:$0xf]
    %v260 = vld [vmem:[%s5 + $0x4] sm:$0xf]
    %v261 = vld [vmem:[%s5 + $0x8] sm:$0xf]
    %v262 = vld [vmem:[%s5 + $0xc] sm:$0xf]
    %v263 = vld [vmem:[%s5 + $0x10] sm:$0xf]
    %v264 = vld [vmem:[%s5 + $0x14] sm:$0xf]
    %v265 = vld [vmem:[%s5 + $0x18] sm:$0xf]
    %v266 = vld [vmem:[%s5 + $0x1c] sm:$0xf]
    %v267 = vld [vmem:[%s5 + $0x20] sm:$0xf]
    %v268 = vld [vmem:[%s5 + $0x24] sm:$0xf]
    %v269 = vld [vmem:[%s5 + $0x28] sm:$0xf]
    %v270 = vld [vmem:[%s5 + $0x2c] sm:$0xf]
    %v271 = vld [vmem:[%s5 + $0x30] sm:$0xf]
    %v272 = vld [vmem:[%s5 + $0x34] sm:$0xf]
    %v273 = vld [vmem:[%s5 + $0x38] sm:$0xf]
    %v274 = vld [vmem:[%s5 + $0x3c] sm:$0xf]
    %v275 = vld [vmem:[%s5 + $0x40] sm:$0xf]
    %v276 = vld [vmem:[%s5 + $0x44] sm:$0xf]
    %v277 = vld [vmem:[%s5 + $0x48] sm:$0xf]
    %v278 = vld [vmem:[%s5 + $0x4c] sm:$0xf]
    %v279 = vld [vmem:[%s5 + $0x50] sm:$0xf]
    %v280 = vld [vmem:[%s5 + $0x54] sm:$0xf]
    %v281 = vld [vmem:[%s5 + $0x58] sm:$0xf]
    %v282 = vld [vmem:[%s5 + $0x5c] sm:$0xf]
    %v283 = vld [vmem:[%s5 + $0x60] sm:$0xf]
    %v284 = vld [vmem:[%s5 + $0x64] sm:$0xf]
    %v285 = vld [vmem:[%s5 + $0x68] sm:$0xf]
    %v286 = vld [vmem:[%s5 + $0x6c] sm:$0xf]
    %v287 = vld [vmem:[%s5 + $0x70] sm:$0xf]
    %v288 = vld [vmem:[%s5 + $0x74] sm:$0xf]
    %v289 = vld [vmem:[%s5 + $0x78] sm:$0xf]
    %v290 = vld [vmem:[%s5 + $0x7c] sm:$0xf]
    %v291 = vld [vmem:[%s6] sm:$0x1]
    %v293 = vlaneseq
    %v294 = vshrl.u32 %v293, 7
    %v295 = vsub.s32 0, %v294
    %v296 = vrot.slane %v291, %v295
    %v330 = vunpack.c.l.b16 %v259
    %v331 = vunpack.c.l.b16 %v260
    %v332 = vunpack.c.l.b16 %v261
    %v333 = vunpack.c.l.b16 %v262
    %v334 = vunpack.c.l.b16 %v263
    %v335 = vunpack.c.l.b16 %v264
    %v336 = vunpack.c.l.b16 %v265
    %v337 = vunpack.c.l.b16 %v266
    %v338 = vunpack.c.l.b16 %v267
    %v339 = vunpack.c.l.b16 %v268
    %v340 = vunpack.c.l.b16 %v269
    %v341 = vunpack.c.l.b16 %v270
    %v342 = vunpack.c.l.b16 %v271
    %v343 = vunpack.c.l.b16 %v272
    %v344 = vunpack.c.l.b16 %v273
    %v345 = vunpack.c.l.b16 %v274
    %v346 = vunpack.c.l.b16 %v275
    %v347 = vunpack.c.l.b16 %v276
    %v348 = vunpack.c.l.b16 %v277
    %v349 = vunpack.c.l.b16 %v278
    %v350 = vunpack.c.l.b16 %v279
    %v351 = vunpack.c.l.b16 %v280
    %v352 = vunpack.c.l.b16 %v281
    %v353 = vunpack.c.l.b16 %v282
    %v354 = vunpack.c.l.b16 %v283
    %v355 = vunpack.c.l.b16 %v284
    %v356 = vunpack.c.l.b16 %v285
    %v357 = vunpack.c.l.b16 %v286
    %v358 = vunpack.c.l.b16 %v287
    %v359 = vunpack.c.l.b16 %v288
    %v360 = vunpack.c.l.b16 %v289
    %v361 = vunpack.c.l.b16 %v290
    %v362 = vpack.c.b16 %v331, %v330
    %v363 = vpack.c.b16 %v333, %v332
    %v364 = vpack.c.b16 %v335, %v334
    %v365 = vpack.c.b16 %v337, %v336
    %v366 = vpack.c.b16 %v339, %v338
    %v367 = vpack.c.b16 %v341, %v340
    %v368 = vpack.c.b16 %v343, %v342
    %v369 = vpack.c.b16 %v345, %v344
    %v370 = vpack.c.b16 %v347, %v346
    %v371 = vpack.c.b16 %v349, %v348
    %v372 = vpack.c.b16 %v351, %v350
    %v373 = vpack.c.b16 %v353, %v352
    %v374 = vpack.c.b16 %v355, %v354
    %v375 = vpack.c.b16 %v357, %v356
    %v376 = vpack.c.b16 %v359, %v358
    %v377 = vpack.c.b16 %v361, %v360
    %394 = vmatprep.subr.bf16.mxu0 0
    %395 = vmatpush1.bf16.msra.mxu0 %v362
    %396 = vmatprep.subr.bf16.mxu0 0
    %397 = vmatpush1.bf16.msra.mxu0 %v363
    %398 = vmatprep.subr.bf16.mxu0 0
    %399 = vmatpush1.bf16.msra.mxu0 %v364
    %400 = vmatprep.subr.bf16.mxu0 0
    %401 = vmatpush1.bf16.msra.mxu0 %v365
    %402 = vmatprep.subr.bf16.mxu0 0
    %403 = vmatpush1.bf16.msra.mxu0 %v366
    %404 = vmatprep.subr.bf16.mxu0 0
    %405 = vmatpush1.bf16.msra.mxu0 %v367
    %406 = vmatprep.subr.bf16.mxu0 0
    %407 = vmatpush1.bf16.msra.mxu0 %v368
    %408 = vmatprep.subr.bf16.mxu0 0
    %409 = vmatpush1.bf16.msra.mxu0 %v369
    %410 = vmatprep.subr.bf16.mxu0 0
    %411 = vmatpush1.bf16.msra.mxu0 %v370
    %412 = vmatprep.subr.bf16.mxu0 0
    %413 = vmatpush1.bf16.msra.mxu0 %v371
    %414 = vmatprep.subr.bf16.mxu0 0
    %415 = vmatpush1.bf16.msra.mxu0 %v372
    %416 = vmatprep.subr.bf16.mxu0 0
    %417 = vmatpush1.bf16.msra.mxu0 %v373
    %418 = vmatprep.subr.bf16.mxu0 0
    %419 = vmatpush1.bf16.msra.mxu0 %v374
    %420 = vmatprep.subr.bf16.mxu0 0
    %421 = vmatpush1.bf16.msra.mxu0 %v375
    %422 = vmatprep.subr.bf16.mxu0 0
    %423 = vmatpush1.bf16.msra.mxu0 %v376
    %424 = vmatprep.subr.bf16.mxu0 0
    %425 = vmatpush1.bf16.msra.mxu0 %v377
    %426 = vmatprep.mubr.bf16.mxu0 %v258
    %427 = vmatmul.mubr.bf16.gmra.mrb[0].mxu0 %v257
    %v428 = vpop.f32.mrb[0].mxu0
    %v429 = vadd.f32 %v296, %v428
    %v430 = vpop.f32.mrb[0].mxu0
    %v431 = vpop.f32.mrb[0].mxu0
    %v432 = vadd.f32 %v296, %v431
    %v433 = vpop.f32.mrb[0].mxu0
    %434 = vdwg.mxu0
    %vm435 = vcmp.ge.f32.partialorder %v429, 0.0
    %vm436 = vcmp.ge.f32.partialorder %v432, 0.0
    %v437 = vmul.f32 %v429, 0.01
    %v438 = vmul.f32 %v432, 0.01
    %v439 = vsel %vm435, %v429, %v437
    %v440 = vsel %vm436, %v432, %v438
    %vm441 = vcmask 523264
    %442 = vst.msk [vmem:[#allocation2] sm:$0xff] %vm441, %v439
    %443 = vst.msk [vmem:[#allocation2 + $0x8] sm:$0xff] %vm441, %v440
    // Predicated region
    $region30: #{tpu_custom_call.1} parent=1 // pred_check
      _
    $region31: #{tpu_custom_call.1} parent=1 // pred_check_branch
      %445 = sbr.rel (0) target = $region33
    $region32: #{tpu_custom_call.1} parent=1 // pred_region
      %s447 = ssub.s32 256, 256
      %448 = vsyncadd [#allocation3], %s447
      %s449 = sshll.u32 [#allocation2], 4
      %s450 = int_to_ptr.vmem [resolvable:$true] %s449
      %455 = dma.vmem_to_hbm [thread:$0]  %s450, 256, %s7, [#allocation3], 128, 128, 8
    $region33: #{tpu_custom_call.1} parent=1 // pred_fallthru
      _
    // Predicated region
    $region34: #{tpu_custom_call.1} parent=1 // pred_check
      _
    $region35: #{tpu_custom_call.1} parent=1 // pred_check_branch
      %457 = sbr.rel (0) target = $region37
    $region36: #{tpu_custom_call.1} parent=1 // pred_region
      %458 = dma.done [#allocation3], 256
    $region37: #{tpu_custom_call.1} parent=1 // pred_fallthru
      _
    %459 = vsyncpa [#allocation3], 1

</llo_original>
